<compile_context>
chip_gen: v7x
topology: tpu7x:2x2x1
jax: 0.10.0
libtpu: 0.0.40
codegen_flags: <defaults>
</compile_context>

<pallas_src>
import functools

import jax
import jax.numpy as jnp
import numpy as np
from jax.experimental import pallas as pl
from jax.experimental.pallas import tpu as pltpu


def channel_attention_kernel(x_ref, w1t_ref, b1_ref, w2t_ref, b2_ref, o_ref, *, inv_hw):
    # x block: (Bblk, C, HW), spatial axis lane-dense, native dtype.
    x = x_ref[...]

    # Global average pool over the lane axis; accumulate in f32 without
    # materialising a full f32 copy of the tile.
    y = jnp.sum(x, axis=-1, dtype=jnp.float32) * inv_hw                 # (Bblk, C)

    # Tiny 2-layer MLP on the pooled rows, batched over Bblk -> MXU matmuls.
    # Weights are pre-oriented/padded so no in-kernel transposes are needed.
    h = jnp.dot(y, w1t_ref[...], preferred_element_type=jnp.float32) + b1_ref[...]
    h = jnp.maximum(h, 0.0)                                             # (Bblk, Crp)
    z = jnp.dot(h, w2t_ref[...], preferred_element_type=jnp.float32) + b2_ref[...]
    gate = jax.nn.sigmoid(z)                                            # (Bblk, C) f32

    # Gated output: gate broadcasts over the HW lane axis; multiply in the
    # native dtype (no full-tile f32 temp).
    o_ref[...] = (x * gate[:, :, None].astype(x.dtype)).astype(o_ref.dtype)


def channel_attention_forward(x, w1, b1, w2, b2):
    """x: (B, C, H, W); w1: (Cr, C); b1: (Cr,); w2: (C, Cr); b2: (C,)."""
    B, C, H, W = x.shape
    Cr = w1.shape[0]
    HW = H * W

    x_flat = x.reshape(B, C, HW)                       # free reshape, no HBM pass

    # Pre-orient + zero-pad the tiny MLP params (hidden dim -> multiple of 128).
    # Padding is exact: padded hidden units see zero weights and zero bias, so
    # relu(0) = 0 and they hit zero rows of w2t -> contribute nothing.
    Crp = max(128, ((Cr + 127) // 128) * 128)
    w1t = jnp.zeros((C, Crp), jnp.float32).at[:, :Cr].set(jnp.asarray(w1, jnp.float32).T)
    b1r = jnp.zeros((1, Crp), jnp.float32).at[0, :Cr].set(jnp.asarray(b1, jnp.float32))
    w2t = jnp.zeros((Crp, C), jnp.float32).at[:Cr, :].set(jnp.asarray(w2, jnp.float32).T)
    b2r = jnp.asarray(b2, jnp.float32).reshape(1, C)

    # --- Block-size / VMEM budgeting -------------------------------------
    itemsize = jnp.dtype(x.dtype).itemsize
    per_image = C * HW * itemsize
    weight_bytes = 4 * (C * Crp + Crp + Crp * C + C)
    budget = 48 * 1024 * 1024        # v7x-safe pipeline budget (64 MiB part)
    slack = 2 * 1024 * 1024
    # Double-buffered in + out blocks must fit: 4 * block <= budget - weights - slack.
    max_block = max(per_image, (budget - 2 * weight_bytes - slack) // 4)
    target_block = min(4 * 1024 * 1024, max_block)
    bblk = int(max(1, min(B, target_block // per_image)))
    block_bytes = bblk * per_image
    num_steps = int(pl.cdiv(B, bblk))

    vmem_limit = 4 * block_bytes + 2 * weight_bytes + slack
    vmem_limit = int(min(max(vmem_limit, 16 * 1024 * 1024), 100 * 1024 * 1024))

    # Deeper input pipelining only when per-step blocks are unavoidably tiny.
    x_spec_kwargs = {}
    if num_steps >= 4 and block_bytes <= 256 * 1024:
        x_spec_kwargs["pipeline_mode"] = pl.Buffered(3)

    kernel = functools.partial(channel_attention_kernel, inv_hw=1.0 / float(HW))

    out_flat = pl.pallas_call(
        kernel,
        out_shape=jax.ShapeDtypeStruct((B, C, HW), x.dtype),
        grid_spec=pltpu.PrefetchScalarGridSpec(
            num_scalar_prefetch=0,
            grid=(num_steps,),
            in_specs=[
                pl.BlockSpec((bblk, C, HW), lambda i: (i, 0, 0), **x_spec_kwargs),
                pl.BlockSpec((C, Crp), lambda i: (0, 0)),
                pl.BlockSpec((1, Crp), lambda i: (0, 0)),
                pl.BlockSpec((Crp, C), lambda i: (0, 0)),
                pl.BlockSpec((1, C), lambda i: (0, 0)),
            ],
            out_specs=pl.BlockSpec((bblk, C, HW), lambda i: (i, 0, 0)),
        ),
        compiler_params=pltpu.CompilerParams(
            dimension_semantics=("parallel",),
            vmem_limit_bytes=vmem_limit,
        ),
    )(x_flat, w1t, b1r, w2t, b2r)

    return out_flat.reshape(B, C, H, W)


def channel_attention_reference(x, w1, b1, w2, b2):
    """Pure-JAX reference matching the PyTorch ChannelAttention.forward."""
    y = jnp.mean(x, axis=(2, 3))                       # (B, C)
    h = jax.nn.relu(y @ w1.T + b1)                     # (B, Cr)
    z = h @ w2.T + b2                                  # (B, C)
    return x * jax.nn.sigmoid(z)[:, :, None, None]


if __name__ == "__main__":
    B, C, H, W = 2, 32, 16, 16
    reduction_ratio = 16
    Cr = C // reduction_ratio

    key = jax.random.PRNGKey(0)
    ks = jax.random.split(key, 5)
    w1 = jax.random.normal(ks[0], (Cr, C), jnp.float32) * 0.2   # Linear(C, C//r).weight
    b1 = jax.random.normal(ks[1], (Cr,), jnp.float32) * 0.1     # Linear(C, C//r).bias
    w2 = jax.random.normal(ks[2], (C, Cr), jnp.float32) * 0.2   # Linear(C//r, C).weight
    b2 = jax.random.normal(ks[3], (C,), jnp.float32) * 0.1      # Linear(C//r, C).bias
    x = jax.random.normal(ks[4], (B, C, H, W), jnp.float32)

    out = jax.block_until_ready(channel_attention_forward(x, w1, b1, w2, b2))
    ref = jax.block_until_ready(channel_attention_reference(x, w1, b1, w2, b2))
    np.testing.assert_allclose(np.asarray(out), np.asarray(ref), rtol=1e-3, atol=1e-4)

    print("KERNEL_OK")
</pallas_src>

<mosaic_0001>
module attributes {stable_mosaic.version = 11 : i64} {
  func.func @channel_attention_kernel(%arg0: i32, %arg1: memref<2x32x256xf32, #tpu.memory_space<vmem>>, %arg2: memref<32x128xf32, #tpu.memory_space<vmem>>, %arg3: memref<1x128xf32, #tpu.memory_space<vmem>>, %arg4: memref<128x32xf32, #tpu.memory_space<vmem>>, %arg5: memref<1x32xf32, #tpu.memory_space<vmem>>, %arg6: memref<2x32x256xf32, #tpu.memory_space<vmem>>) attributes {dimension_semantics = [#tpu.dimension_semantics<parallel>], iteration_bounds = array<i64: 1>, scalar_prefetch = 0 : i64, scratch_operands = 0 : i64, tpu.core_type = #tpu.core_type<tc>, window_params = [{transform_indices = @transform_0, window_bounds = array<i64: 2, 32, 256>}, {pipeline_mode = #tpu.pipeline_mode<synchronous>, transform_indices = @transform_1, window_bounds = array<i64: 32, 128>}, {pipeline_mode = #tpu.pipeline_mode<synchronous>, transform_indices = @transform_2, window_bounds = array<i64: 1, 128>}, {pipeline_mode = #tpu.pipeline_mode<synchronous>, transform_indices = @transform_3, window_bounds = array<i64: 128, 32>}, {pipeline_mode = #tpu.pipeline_mode<synchronous>, transform_indices = @transform_4, window_bounds = array<i64: 1, 32>}, {transform_indices = @transform_5, window_bounds = array<i64: 2, 32, 256>}]} {
    %c0 = arith.constant 0 : index
    %c0_0 = arith.constant 0 : index
    %c0_1 = arith.constant 0 : index
    %0 = vector.load %arg1[%c0, %c0_0, %c0_1] : memref<2x32x256xf32, #tpu.memory_space<vmem>>, vector<2x32x256xf32>
    %cst = arith.constant dense<0.000000e+00> : vector<2x32xf32>
    %1 = vector.multi_reduction <add>, %0, %cst [2] : vector<2x32x256xf32> to vector<2x32xf32>
    %cst_2 = arith.constant 3.906250e-03 : f32
    %2 = vector.broadcast %cst_2 : f32 to vector<2x32xf32>
    %3 = arith.mulf %1, %2 : vector<2x32xf32>
    %c0_3 = arith.constant 0 : index
    %c0_4 = arith.constant 0 : index
    %4 = vector.load %arg2[%c0_3, %c0_4] : memref<32x128xf32, #tpu.memory_space<vmem>>, vector<32x128xf32>
    %cst_5 = arith.constant dense<0.000000e+00> : vector<2x128xf32>
    %5 = tpu.matmul %3, %4, %cst_5 {dimension_numbers = #tpu.dot_dimension_numbers<[1], [0], [0], [1], [0, 0, 1, 1], [], []>} : vector<2x32xf32>, vector<32x128xf32>, vector<2x128xf32> -> vector<2x128xf32>
    %c0_6 = arith.constant 0 : index
    %c0_7 = arith.constant 0 : index
    %6 = vector.load %arg3[%c0_6, %c0_7] : memref<1x128xf32, #tpu.memory_space<vmem>>, vector<1x128xf32>
    %7 = vector.broadcast %6 : vector<1x128xf32> to vector<2x128xf32>
    %8 = arith.addf %5, %7 : vector<2x128xf32>
    %cst_8 = arith.constant 0.000000e+00 : f32
    %9 = vector.broadcast %cst_8 : f32 to vector<2x128xf32>
    %10 = arith.maximumf %8, %9 : vector<2x128xf32>
    %c0_9 = arith.constant 0 : index
    %c0_10 = arith.constant 0 : index
    %11 = vector.load %arg4[%c0_9, %c0_10] : memref<128x32xf32, #tpu.memory_space<vmem>>, vector<128x32xf32>
    %cst_11 = arith.constant dense<0.000000e+00> : vector<2x32xf32>
    %12 = tpu.matmul %10, %11, %cst_11 {dimension_numbers = #tpu.dot_dimension_numbers<[1], [0], [0], [1], [0, 0, 1, 1], [], []>} : vector<2x128xf32>, vector<128x32xf32>, vector<2x32xf32> -> vector<2x32xf32>
    %c0_12 = arith.constant 0 : index
    %c0_13 = arith.constant 0 : index
    %13 = vector.load %arg5[%c0_12, %c0_13] : memref<1x32xf32, #tpu.memory_space<vmem>>, vector<1x32xf32>
    %14 = vector.broadcast %13 : vector<1x32xf32> to vector<2x32xf32>
    %15 = arith.addf %12, %14 : vector<2x32xf32>
    %16 = arith.negf %15 : vector<2x32xf32>
    %17 = math.exp %16 : vector<2x32xf32>
    %cst_14 = arith.constant 1.000000e+00 : f32
    %18 = vector.broadcast %cst_14 : f32 to vector<2x32xf32>
    %19 = arith.addf %18, %17 : vector<2x32xf32>
    %20 = arith.divf %18, %19 : vector<2x32xf32>
    %21 = vector.shape_cast %20 : vector<2x32xf32> to vector<2x32x1xf32>
    %22 = vector.broadcast %21 : vector<2x32x1xf32> to vector<2x32x256xf32>
    %23 = arith.mulf %0, %22 : vector<2x32x256xf32>
    %c0_15 = arith.constant 0 : index
    %c0_16 = arith.constant 0 : index
    %c0_17 = arith.constant 0 : index
    %24 = vector.load %arg6[%c0_15, %c0_16, %c0_17] : memref<2x32x256xf32, #tpu.memory_space<vmem>>, vector<2x32x256xf32>
    tpu.vector_store %arg6[%c0_15, %c0_16, %c0_17], %23 {strides = array<i32>} : memref<2x32x256xf32, #tpu.memory_space<vmem>>, vector<2x32x256xf32>,
    return
  }
  func.func @transform_0(%arg0: i32) -> (i32, i32, i32) {
    %c0_i32 = arith.constant 0 : i32
    %c0_i32_0 = arith.constant 0 : i32
    %c0_i32_1 = arith.constant 0 : i32
    return %arg0, %c0_i32, %c0_i32_0 : i32, i32, i32
  }
  func.func @transform_1(%arg0: i32) -> (i32, i32) {
    %c0_i32 = arith.constant 0 : i32
    %c0_i32_0 = arith.constant 0 : i32
    %c0_i32_1 = arith.constant 0 : i32
    return %c0_i32, %c0_i32_0 : i32, i32
  }
  func.func @transform_2(%arg0: i32) -> (i32, i32) {
    %c0_i32 = arith.constant 0 : i32
    %c0_i32_0 = arith.constant 0 : i32
    %c0_i32_1 = arith.constant 0 : i32
    return %c0_i32, %c0_i32_0 : i32, i32
  }
  func.func @transform_3(%arg0: i32) -> (i32, i32) {
    %c0_i32 = arith.constant 0 : i32
    %c0_i32_0 = arith.constant 0 : i32
    %c0_i32_1 = arith.constant 0 : i32
    return %c0_i32, %c0_i32_0 : i32, i32
  }
  func.func @transform_4(%arg0: i32) -> (i32, i32) {
    %c0_i32 = arith.constant 0 : i32
    %c0_i32_0 = arith.constant 0 : i32
    %c0_i32_1 = arith.constant 0 : i32
    return %c0_i32, %c0_i32_0 : i32, i32
  }
  func.func @transform_5(%arg0: i32) -> (i32, i32, i32) {
    %c0_i32 = arith.constant 0 : i32
    %c0_i32_0 = arith.constant 0 : i32
    %c0_i32_1 = arith.constant 0 : i32
    return %arg0, %c0_i32, %c0_i32_0 : i32, i32, i32
  }
}

</mosaic_0001>

<llo_original>
// kernel: tpu_custom_call.1
$region0: #{tpu_custom_call.1}
  #allocation0 [shape = 'u32[]', space=smem, size = 0x4, offset = 0x4, fixed_abs, tag = 'smem constant byte address 0x4 - core index']
  #allocation1 [shape = 'u32[144,128]{1,0:T(1,128)}', space=vmem, size = 0x12000, scoped, tag = 'internal scratch']
  %s0 = inlined_call_operand.vmem [shape: f32[2,32,256], index: 0, kind: input, shape index: {}]
  %s1 = inlined_call_operand.vmem [shape: f32[32,128], index: 1, kind: input, shape index: {}]
  %s2 = inlined_call_operand.vmem [shape: f32[1,128], index: 2, kind: input, shape index: {}]
  %s3 = inlined_call_operand.vmem [shape: f32[128,32], index: 3, kind: input, shape index: {}]
  %s4 = inlined_call_operand.vmem [shape: f32[1,32], index: 4, kind: input, shape index: {}]
  %s5 = inlined_call_operand.hbm [shape: f32[2,32,256], index: 5, kind: output, shape index: {}]
  %s6 = sld [smem:[#allocation0]]
  $region30: #{tpu_custom_call.1} parent=0
    _
  %s8 = ssub.s32 1, %s6
  %s9 = scalar_select 0, %s8, %s6
  $region1: #{tpu_custom_call.1} parent=0
    #allocation2 [shape = 'u8[65536]{0}', space=vmem, size = 0x10000, scoped, tag = 'output window, operand 0, single buffered']
    #allocation3 [shape = 's32[1]{0}', space=sflag, size = 0x4, scoped, tag = 'scoped memory for tpu_custom_call.1']
    %10 = vsyncpa [#allocation3], 0
    // Predicated region
    $region2: #{tpu_custom_call.1} parent=1 // pred_check
      _
    $region3: #{tpu_custom_call.1} parent=1 // pred_check_branch
      %12 = sbr.rel (0) target = $region5
    $region4: #{tpu_custom_call.1} parent=1 // pred_region
      _
    $region5: #{tpu_custom_call.1} parent=1 // pred_fallthru
      _
    // Predicated region
    $region6: #{tpu_custom_call.1} parent=1 // pred_check
      _
    $region7: #{tpu_custom_call.1} parent=1 // pred_check_branch
      %14 = sbr.rel (0) target = $region9
    $region8: #{tpu_custom_call.1} parent=1 // pred_region
      _
    $region9: #{tpu_custom_call.1} parent=1 // pred_fallthru
      _
    // Predicated region
    $region10: #{tpu_custom_call.1} parent=1 // pred_check
      _
    $region11: #{tpu_custom_call.1} parent=1 // pred_check_branch
      %16 = sbr.rel (0) target = $region13
    $region12: #{tpu_custom_call.1} parent=1 // pred_region
      _
    $region13: #{tpu_custom_call.1} parent=1 // pred_fallthru
      _
    // Predicated region
    $region14: #{tpu_custom_call.1} parent=1 // pred_check
      _
    $region15: #{tpu_custom_call.1} parent=1 // pred_check_branch
      %18 = sbr.rel (0) target = $region17
    $region16: #{tpu_custom_call.1} parent=1 // pred_region
      _
    $region17: #{tpu_custom_call.1} parent=1 // pred_fallthru
      _
    // Predicated region
    $region18: #{tpu_custom_call.1} parent=1 // pred_check
      _
    $region19: #{tpu_custom_call.1} parent=1 // pred_check_branch
      %20 = sbr.rel (0) target = $region21
    $region20: #{tpu_custom_call.1} parent=1 // pred_region
      _
    $region21: #{tpu_custom_call.1} parent=1 // pred_fallthru
      _
    %v21 = vld [vmem:[%s0] sm:$0xff]
    %v22 = vld [vmem:[%s0 + $0x8] sm:$0xff]
    %v23 = vld [vmem:[%s0 + $0x10] sm:$0xff]
    %v24 = vld [vmem:[%s0 + $0x18] sm:$0xff]
    %v25 = vld [vmem:[%s0 + $0x20] sm:$0xff]
    %v26 = vld [vmem:[%s0 + $0x28] sm:$0xff]
    %v27 = vld [vmem:[%s0 + $0x30] sm:$0xff]
    %v28 = vld [vmem:[%s0 + $0x38] sm:$0xff]
    %v29 = vld [vmem:[%s0 + $0x40] sm:$0xff]
    %v30 = vld [vmem:[%s0 + $0x48] sm:$0xff]
    %v31 = vld [vmem:[%s0 + $0x50] sm:$0xff]
    %v32 = vld [vmem:[%s0 + $0x58] sm:$0xff]
    %v33 = vld [vmem:[%s0 + $0x60] sm:$0xff]
    %v34 = vld [vmem:[%s0 + $0x68] sm:$0xff]
    %v35 = vld [vmem:[%s0 + $0x70] sm:$0xff]
    %v36 = vld [vmem:[%s0 + $0x78] sm:$0xff]
    %v37 = vadd.f32 %v21, %v22
    %38 = vadd.xlane.f32.xlu0 %v37
    %v39 = vpop.xlane.xlu0 %38
    %v40 = vadd.f32 %v23, %v24
    %41 = vadd.xlane.f32.xlu0 %v40
    %v42 = vpop.xlane.xlu0 %41
    %v43 = vadd.f32 %v25, %v26
    %44 = vadd.xlane.f32.xlu0 %v43
    %v45 = vpop.xlane.xlu0 %44
    %v46 = vadd.f32 %v27, %v28
    %47 = vadd.xlane.f32.xlu0 %v46
    %v48 = vpop.xlane.xlu0 %47
    %v49 = vadd.f32 %v29, %v30
    %50 = vadd.xlane.f32.xlu0 %v49
    %v51 = vpop.xlane.xlu0 %50
    %v52 = vadd.f32 %v31, %v32
    %53 = vadd.xlane.f32.xlu0 %v52
    %v54 = vpop.xlane.xlu0 %53
    %v55 = vadd.f32 %v33, %v34
    %56 = vadd.xlane.f32.xlu0 %v55
    %v57 = vpop.xlane.xlu0 %56
    %v58 = vadd.f32 %v35, %v36
    %59 = vadd.xlane.f32.xlu0 %v58
    %v60 = vpop.xlane.xlu0 %59
    %v61 = vmul.f32 %v39, 0.00390625
    %v62 = vmul.f32 %v42, 0.00390625
    %v63 = vmul.f32 %v45, 0.00390625
    %v64 = vmul.f32 %v48, 0.00390625
    %v65 = vmul.f32 %v51, 0.00390625
    %v66 = vmul.f32 %v54, 0.00390625
    %v67 = vmul.f32 %v57, 0.00390625
    %v68 = vmul.f32 %v60, 0.00390625
    %v69 = vld [vmem:[%s1] sm:$0xff]
    %v70 = vld [vmem:[%s1 + $0x8] sm:$0xff]
    %v71 = vld [vmem:[%s1 + $0x10] sm:$0xff]
    %v72 = vld [vmem:[%s1 + $0x18] sm:$0xff]
    %v73 = vld [vmem:[%s2] sm:$0x1]
    %v75 = vlaneseq
    %v76 = vshrl.u32 %v75, 7
    %v77 = vsub.s32 0, %v76
    %v78 = vrot.slane %v73, %v77
    %v88 = vlaneseq
    %v89 = vand.u32 %v88, 127
    %v90 = vlaneseq
    %v91 = vshrl.u32 %v90, 7
    %v92 = vsub.s32 %v89, %v91
    %v93 = vrot.slane %v61, %v92
    %v94 = vadd.s32 %v89, 4294967288
    %v95 = vlaneseq
    %v96 = vshrl.u32 %v95, 7
    %v97 = vsub.s32 %v94, %v96
    %v98 = vrot.slane %v62, %v97
    %vm99 = vcmask 130112
    %v100 = vsel %vm99, %v98, %v93
    %v101 = vadd.s32 %v89, 4294967280
    %v102 = vlaneseq
    %v103 = vshrl.u32 %v102, 7
    %v104 = vsub.s32 %v101, %v103
    %v105 = vrot.slane %v63, %v104
    %vm106 = vcmask 195712
    %v107 = vsel %vm106, %v105, %v100
    %v108 = vadd.s32 %v89, 4294967272
    %v109 = vlaneseq
    %v110 = vshrl.u32 %v109, 7
    %v111 = vsub.s32 %v108, %v110
    %v112 = vrot.slane %v64, %v111
    %vm113 = vcmask 261312
    %v114 = vsel %vm113, %v112, %v107
    %v115 = vlaneseq
    %v116 = vshrl.u32 %v115, 7
    %v117 = vsub.s32 %v89, %v116
    %v118 = vrot.slane %v65, %v117
    %v119 = vlaneseq
    %v120 = vshrl.u32 %v119, 7
    %v121 = vsub.s32 %v94, %v120
    %v122 = vrot.slane %v66, %v121
    %v123 = vsel %vm99, %v122, %v118
    %v124 = vlaneseq
    %v125 = vshrl.u32 %v124, 7
    %v126 = vsub.s32 %v101, %v125
    %v127 = vrot.slane %v67, %v126
    %v128 = vsel %vm106, %v127, %v123
    %v129 = vlaneseq
    %v130 = vshrl.u32 %v129, 7
    %v131 = vsub.s32 %v108, %v130
    %v132 = vrot.slane %v68, %v131
    %v133 = vsel %vm113, %v132, %v128
    %vm134 = vcmask 1041409
    %v135 = vsel %vm134, %v133, %v114
    %vm136 = vcmask 261120
    %v137 = vsel %vm136, %v135, 0
    %139 = vmatprep.subr.mxu0 0.0
    %140 = vmatpush1.msra.mxu0 %v69
    %141 = vmatprep.subr.mxu0 0.0
    %142 = vmatpush1.msra.mxu0 %v70
    %143 = vmatprep.subr.mxu0 0.0
    %144 = vmatpush1.msra.mxu0 %v71
    %145 = vmatprep.subr.mxu0 0.0
    %146 = vmatpush1.msra.mxu0 %v72
    %147 = vmatprep.subr.mxu0 0.0
    %148 = vmatpush1.msra.mxu0 0.0
    %149 = vmatprep.subr.mxu0 0.0
    %150 = vmatpush1.msra.mxu0 0.0
    %151 = vmatprep.subr.mxu0 0.0
    %152 = vmatpush1.msra.mxu0 0.0
    %153 = vmatprep.subr.mxu0 0.0
    %154 = vmatpush1.msra.mxu0 0.0
    %155 = vmatprep.subr.mxu0 0.0
    %156 = vmatpush1.msra.mxu0 0.0
    %157 = vmatprep.subr.mxu0 0.0
    %158 = vmatpush1.msra.mxu0 0.0
    %159 = vmatprep.subr.mxu0 0.0
    %160 = vmatpush1.msra.mxu0 0.0
    %161 = vmatprep.subr.mxu0 0.0
    %162 = vmatpush1.msra.mxu0 0.0
    %163 = vmatprep.subr.mxu0 0.0
    %164 = vmatpush1.msra.mxu0 0.0
    %165 = vmatprep.subr.mxu0 0.0
    %166 = vmatpush1.msra.mxu0 0.0
    %167 = vmatprep.subr.mxu0 0.0
    %168 = vmatpush1.msra.mxu0 0.0
    %169 = vmatprep.subr.mxu0 0.0
    %170 = vmatpush1.msra.mxu0 0.0
    %171 = vmatprep.subr.mxu0 0.0
    %172 = vmatpush1.msra.mxu0 0.0
    %173 = vmatprep.subr.mxu0 0.0
    %174 = vmatpush1.msra.mxu0 0.0
    %175 = vmatprep.subr.mxu0 0.0
    %176 = vmatpush1.msra.mxu0 0.0
    %177 = vmatprep.subr.mxu0 0.0
    %178 = vmatpush1.msra.mxu0 0.0
    %179 = vmatprep.subr.mxu0 0.0
    %180 = vmatpush1.msra.mxu0 0.0
    %181 = vmatprep.subr.mxu0 0.0
    %182 = vmatpush1.msra.mxu0 0.0
    %183 = vmatprep.subr.mxu0 0.0
    %184 = vmatpush1.msra.mxu0 0.0
    %185 = vmatprep.subr.mxu0 0.0
    %186 = vmatpush1.msra.mxu0 0.0
    %187 = vmatprep.subr.mxu0 0.0
    %188 = vmatpush1.msra.mxu0 0.0
    %189 = vmatprep.subr.mxu0 0.0
    %190 = vmatpush1.msra.mxu0 0.0
    %191 = vmatprep.subr.mxu0 0.0
    %192 = vmatpush1.msra.mxu0 0.0
    %193 = vmatprep.subr.mxu0 0.0
    %194 = vmatpush1.msra.mxu0 0.0
    %195 = vmatprep.subr.mxu0 0.0
    %196 = vmatpush1.msra.mxu0 0.0
    %197 = vmatprep.subr.mxu0 0.0
    %198 = vmatpush1.msra.mxu0 0.0
    %199 = vmatprep.subr.mxu0 0.0
    %200 = vmatpush1.msra.mxu0 0.0
    %201 = vmatprep.subr.mxu0 0.0
    %202 = vmatpush1.msra.mxu0 0.0
    %203 = vmatprep.mubr.f32.mxu0 0.0
    %204 = vmatmul.mubr.f32.gmra.mrb[0].mxu0 %v137
    %v205 = vpop.f32.mrb[0].mxu0
    %v206 = vadd.f32 %v78, %v205
    %v207 = vpop.f32.mrb[0].mxu0
    %208 = vdwg.mxu0
    %v209 = vmax.f32 %v206, 0.0
    %v210 = vld [vmem:[%s3] sm:$0xff]
    %v211 = vld [vmem:[%s3 + $0x8] sm:$0xff]
    %v212 = vld [vmem:[%s3 + $0x10] sm:$0xff]
    %v213 = vld [vmem:[%s3 + $0x18] sm:$0xff]
    %v214 = vld [vmem:[%s3 + $0x20] sm:$0xff]
    %v215 = vld [vmem:[%s3 + $0x28] sm:$0xff]
    %v216 = vld [vmem:[%s3 + $0x30] sm:$0xff]
    %v217 = vld [vmem:[%s3 + $0x38] sm:$0xff]
    %v218 = vld [vmem:[%s3 + $0x40] sm:$0xff]
    %v219 = vld [vmem:[%s3 + $0x48] sm:$0xff]
    %v220 = vld [vmem:[%s3 + $0x50] sm:$0xff]
    %v221 = vld [vmem:[%s3 + $0x58] sm:$0xff]
    %v222 = vld [vmem:[%s3 + $0x60] sm:$0xff]
    %v223 = vld [vmem:[%s3 + $0x68] sm:$0xff]
    %v224 = vld [vmem:[%s3 + $0x70] sm:$0xff]
    %v225 = vld [vmem:[%s3 + $0x78] sm:$0xff]
    %v226 = vld [vmem:[%s4] sm:$0x1]
    %v228 = vlaneseq
    %v229 = vshrl.u32 %v228, 7
    %v230 = vsub.s32 0, %v229
    %v231 = vrot.slane %v226, %v230
    %233 = vmatprep.subr.mxu0 0.0
    %234 = vmatpush1.msra.mxu0 %v210
    %235 = vmatprep.subr.mxu0 0.0
    %236 = vmatpush1.msra.mxu0 %v211
    %237 = vmatprep.subr.mxu0 0.0
    %238 = vmatpush1.msra.mxu0 %v212
    %239 = vmatprep.subr.mxu0 0.0
    %240 = vmatpush1.msra.mxu0 %v213
    %241 = vmatprep.subr.mxu0 0.0
    %242 = vmatpush1.msra.mxu0 %v214
    %243 = vmatprep.subr.mxu0 0.0
    %244 = vmatpush1.msra.mxu0 %v215
    %245 = vmatprep.subr.mxu0 0.0
    %246 = vmatpush1.msra.mxu0 %v216
    %247 = vmatprep.subr.mxu0 0.0
    %248 = vmatpush1.msra.mxu0 %v217
    %249 = vmatprep.subr.mxu0 0.0
    %250 = vmatpush1.msra.mxu0 %v218
    %251 = vmatprep.subr.mxu0 0.0
    %252 = vmatpush1.msra.mxu0 %v219
    %253 = vmatprep.subr.mxu0 0.0
    %254 = vmatpush1.msra.mxu0 %v220
    %255 = vmatprep.subr.mxu0 0.0
    %256 = vmatpush1.msra.mxu0 %v221
    %257 = vmatprep.subr.mxu0 0.0
    %258 = vmatpush1.msra.mxu0 %v222
    %259 = vmatprep.subr.mxu0 0.0
    %260 = vmatpush1.msra.mxu0 %v223
    %261 = vmatprep.subr.mxu0 0.0
    %262 = vmatpush1.msra.mxu0 %v224
    %263 = vmatprep.subr.mxu0 0.0
    %264 = vmatpush1.msra.mxu0 %v225
    %265 = vmatprep.subr.mxu0 0.0
    %266 = vmatpush1.msra.mxu0 0.0
    %267 = vmatprep.subr.mxu0 0.0
    %268 = vmatpush1.msra.mxu0 0.0
    %269 = vmatprep.subr.mxu0 0.0
    %270 = vmatpush1.msra.mxu0 0.0
    %271 = vmatprep.subr.mxu0 0.0
    %272 = vmatpush1.msra.mxu0 0.0
    %273 = vmatprep.subr.mxu0 0.0
    %274 = vmatpush1.msra.mxu0 0.0
    %275 = vmatprep.subr.mxu0 0.0
    %276 = vmatpush1.msra.mxu0 0.0
    %277 = vmatprep.subr.mxu0 0.0
    %278 = vmatpush1.msra.mxu0 0.0
    %279 = vmatprep.subr.mxu0 0.0
    %280 = vmatpush1.msra.mxu0 0.0
    %281 = vmatprep.subr.mxu0 0.0
    %282 = vmatpush1.msra.mxu0 0.0
    %283 = vmatprep.subr.mxu0 0.0
    %284 = vmatpush1.msra.mxu0 0.0
    %285 = vmatprep.subr.mxu0 0.0
    %286 = vmatpush1.msra.mxu0 0.0
    %287 = vmatprep.subr.mxu0 0.0
    %288 = vmatpush1.msra.mxu0 0.0
    %289 = vmatprep.subr.mxu0 0.0
    %290 = vmatpush1.msra.mxu0 0.0
    %291 = vmatprep.subr.mxu0 0.0
    %292 = vmatpush1.msra.mxu0 0.0
    %293 = vmatprep.subr.mxu0 0.0
    %294 = vmatpush1.msra.mxu0 0.0
    %295 = vmatprep.subr.mxu0 0.0
    %296 = vmatpush1.msra.mxu0 0.0
    %297 = vmatprep.mubr.f32.mxu0 0.0
    %298 = vmatmul.mubr.f32.gmra.mrb[0].mxu0 %v209
    %v299 = vpop.f32.mrb[0].mxu0
    %v300 = vadd.f32 %v231, %v299
    %v301 = vpop.f32.mrb[0].mxu0
    %302 = vdwg.mxu0
    %v303 = vxor.u32 %v300, 2147483648
    %v304 = vmul.f32 %v303, 1.442695
    %v305 = vpow.pop %v304
    %v306 = vadd.f32 %v305, 1.0
    %v307 = vrcp.pop %v306
    %v308 = vmul.f32 1.0, %v307
    %v309 = vlaneseq
    %v310 = vshrl.u32 %v309, 7
    %v311 = vsub.s32 0, %v310
    %v312 = vrot.slane %v308, %v311
    %314 = vbcast.lane.b32.xlu0 %v312, 256
    %v315 = vpop.permute.xlu0 %314
    %s317 = sor.u32 256, 8
    %318 = vbcast.lane.b32.xlu0 %v312, %s317
    %v319 = vpop.permute.xlu0 %318
    %s321 = sor.u32 256, 16
    %322 = vbcast.lane.b32.xlu0 %v312, %s321
    %v323 = vpop.permute.xlu0 %322
    %s325 = sor.u32 256, 24
    %326 = vbcast.lane.b32.xlu0 %v312, %s325
    %v327 = vpop.permute.xlu0 %326
    %v328 = vlaneseq
    %v329 = vshrl.u32 %v328, 7
    %v330 = vsub.s32 1, %v329
    %v331 = vrot.slane %v308, %v330
    %333 = vbcast.lane.b32.xlu0 %v331, 256
    %v334 = vpop.permute.xlu0 %333
    %s336 = sor.u32 256, 8
    %337 = vbcast.lane.b32.xlu0 %v331, %s336
    %v338 = vpop.permute.xlu0 %337
    %s340 = sor.u32 256, 16
    %341 = vbcast.lane.b32.xlu0 %v331, %s340
    %v342 = vpop.permute.xlu0 %341
    %s344 = sor.u32 256, 24
    %345 = vbcast.lane.b32.xlu0 %v331, %s344
    %v346 = vpop.permute.xlu0 %345
    %v347 = vmul.f32 %v21, %v315
    %v348 = vmul.f32 %v22, %v315
    %v349 = vmul.f32 %v23, %v319
    %v350 = vmul.f32 %v24, %v319
    %v351 = vmul.f32 %v25, %v323
    %v352 = vmul.f32 %v26, %v323
    %v353 = vmul.f32 %v27, %v327
    %v354 = vmul.f32 %v28, %v327
    %v355 = vmul.f32 %v29, %v334
    %v356 = vmul.f32 %v30, %v334
    %v357 = vmul.f32 %v31, %v338
    %v358 = vmul.f32 %v32, %v338
    %v359 = vmul.f32 %v33, %v342
    %v360 = vmul.f32 %v34, %v342
    %v361 = vmul.f32 %v35, %v346
    %v362 = vmul.f32 %v36, %v346
    %363 = vst [vmem:[#allocation2] sm:$0xff] %v347
    %364 = vst [vmem:[#allocation2 + $0x8] sm:$0xff] %v348
    %365 = vst [vmem:[#allocation2 + $0x10] sm:$0xff] %v349
    %366 = vst [vmem:[#allocation2 + $0x18] sm:$0xff] %v350
    %367 = vst [vmem:[#allocation2 + $0x20] sm:$0xff] %v351
    %368 = vst [vmem:[#allocation2 + $0x28] sm:$0xff] %v352
    %369 = vst [vmem:[#allocation2 + $0x30] sm:$0xff] %v353
    %370 = vst [vmem:[#allocation2 + $0x38] sm:$0xff] %v354
    %371 = vst [vmem:[#allocation2 + $0x40] sm:$0xff] %v355
    %372 = vst [vmem:[#allocation2 + $0x48] sm:$0xff] %v356
    %373 = vst [vmem:[#allocation2 + $0x50] sm:$0xff] %v357
    %374 = vst [vmem:[#allocation2 + $0x58] sm:$0xff] %v358
    %375 = vst [vmem:[#allocation2 + $0x60] sm:$0xff] %v359
    %376 = vst [vmem:[#allocation2 + $0x68] sm:$0xff] %v360
    %377 = vst [vmem:[#allocation2 + $0x70] sm:$0xff] %v361
    %378 = vst [vmem:[#allocation2 + $0x78] sm:$0xff] %v362
    // Predicated region
    $region22: #{tpu_custom_call.1} parent=1 // pred_check
      _
    $region23: #{tpu_custom_call.1} parent=1 // pred_check_branch
      %380 = sbr.rel (0) target = $region25
    $region24: #{tpu_custom_call.1} parent=1 // pred_region
      %s382 = ssub.s32 2048, 2048
      %383 = vsyncadd [#allocation3], %s382
      %s384 = sshll.u32 [#allocation2], 4
      %s385 = int_to_ptr.vmem [resolvable:$true] %s384
      %390 = dma.vmem_to_hbm [thread:$0]  %s385, 2048, %s5, [#allocation3], 256, 256, 16
    $region25: #{tpu_custom_call.1} parent=1 // pred_fallthru
      _
    // Predicated region
    $region26: #{tpu_custom_call.1} parent=1 // pred_check
      _
    $region27: #{tpu_custom_call.1} parent=1 // pred_check_branch
      %392 = sbr.rel (0) target = $region29
    $region28: #{tpu_custom_call.1} parent=1 // pred_region
      %393 = dma.done [#allocation3], 2048
    $region29: #{tpu_custom_call.1} parent=1 // pred_fallthru
      _
    %394 = vsyncpa [#allocation3], 1

</llo_original>
